<compile_context>
chip_gen: v6e
topology: v6e:2x2x1
jax: 0.10.0
libtpu: 0.0.40
codegen_flags: <defaults>
</compile_context>

<pallas_src>
import jax
import jax.numpy as jnp
from jax import lax
from jax.experimental import pallas as pl
from jax.experimental.pallas import tpu as pltpu


def _round_up(n, m):
    return ((n + m - 1) // m) * m


def _choose_tile(b_pad, cap):
    """Largest multiple-of-128 tile that divides b_pad and is <= cap.

    When b_pad >= 256, prefer a tile that yields an even number (>=2) of grid
    steps so v7x's two TensorCores both get work under ("parallel",).
    """
    n128 = b_pad // 128
    divs = [d for d in range(1, n128 + 1) if n128 % d == 0]
    tiles = [128 * d for d in divs if 128 * d <= cap] or [128]
    if b_pad >= 256:
        even = [t for t in tiles if (b_pad // t) % 2 == 0]
        if even:
            return max(even)
    return max(tiles)


# ----------------------------------------------------------------------------
# Pallas kernel: fused 3-layer MLP; activations transposed to [features, batch].
# ----------------------------------------------------------------------------
def _mlp_kernel(x_ref, w1_ref, b1_ref, w2_ref, b2_ref, w3_ref, b3_ref, o_ref):
    # x tile arrives in natural [tile_m, in] f32 layout; cast to bf16 here and
    # contract the feature axis of BOTH operands so the result is [mid, tile_m]
    # (batch on the 128-wide lane axis).  The implicit operand transpose rides
    # the MXU/XLU path and hides under the x-tile DMA.
    xb = x_ref[...].astype(jnp.bfloat16)
    h1 = lax.dot_general(w1_ref[...], xb,
                         dimension_numbers=(((1,), (1,)), ((), ())),
                         preferred_element_type=jnp.float32)
    h1 = jnp.maximum(h1 + b1_ref[...], 0.0)            # f32 bias/ReLU (VPU)
    # Layer 2 (MXU): [mid//2, mid] @ [mid, tile_m] -> [mid//2, tile_m]
    h2 = jnp.dot(w2_ref[...], h1.astype(jnp.bfloat16),
                 preferred_element_type=jnp.float32)
    h2 = jnp.maximum(h2 + b2_ref[...], 0.0)
    # Layer 3: single output feature -> skip the MXU; VPU multiply + sublane
    # (XLU) reduction keeps it off the matmul path and lane-dense.
    out = jnp.sum(h2 * w3_ref[...], axis=0, keepdims=True) + b3_ref[...]
    o_ref[...] = out.astype(o_ref.dtype)                # lane-dense [1, tile_m]


def mlp_forward(x, w1, b1, w2, b2, w3, b3, *, tile_m=4096):
    """Fused MLP forward.  x: [B, in] float32.  Returns [B, 1] float32.

    Weights follow the PyTorch [out, in] convention; biases are [out, 1]
    columns; w3 is the [mid//2, 1] column of the final layer.
    """
    B, in_size = x.shape
    mid = w1.shape[0]
    mid_half = w2.shape[0]

    # Pad the batch only to the next multiple of 128 (one vreg lane-row), NOT
    # to a whole large tile, so dead work stays tiny for odd batch sizes.
    B_pad = _round_up(B, 128)
    if B_pad != B:
        x = jnp.pad(x, ((0, B_pad - B), (0, 0)))

    # VMEM budget check (matters on v7x: 64 MiB physical / 32 MiB scoped
    # default).  Count up-to-triple-buffered f32 x tiles, live f32 h1/h2, the
    # double-buffered output, and the replicated weights; shrink the tile cap
    # until it fits with headroom.  v5e/v6e (128 MiB) are never the binding
    # constraint at these sizes.
    budget = 24 * 1024 * 1024
    wgt_bytes = 4 * (mid * in_size + mid + mid_half * mid + 2 * mid_half + 1)

    def est_bytes(t):
        x_buf = 3 * t * in_size * 4           # buffered f32 x tiles
        act = t * (mid + mid_half) * 4        # live f32 h1 + h2
        out_b = 2 * t * 4                     # double-buffered [1, t] output
        return x_buf + act + out_b + 2 * wgt_bytes

    cap = max(128, min((tile_m // 128) * 128, B_pad))
    while cap > 128 and est_bytes(cap) > budget:
        cap -= 128
    tile = _choose_tile(B_pad, cap)
    num_steps = B_pad // tile

    # Per-step compute is tiny relative to the x-tile fetch: once the grid has
    # enough steps, triple-buffer the x input to keep the DMA engine saturated.
    x_spec_kwargs = {}
    if num_steps >= 3:
        x_spec_kwargs["pipeline_mode"] = pl.Buffered(3)
    x_spec = pl.BlockSpec((tile, in_size), lambda i: (i, 0), **x_spec_kwargs)

    # Advisory cost so XLA can overlap producers/consumers with this short,
    # memory-bound kernel instead of serializing around an unknown custom call.
    flops = 2 * B_pad * (in_size * mid + mid * mid_half + mid_half)
    bytes_accessed = 4 * B_pad * in_size + 4 * B_pad + wgt_bytes
    cost = pl.CostEstimate(flops=flops, transcendentals=0,
                           bytes_accessed=bytes_accessed)

    # Weight/bias blocks use constant block indices -> Pallas keeps them
    # resident in VMEM and skips re-DMA across steps (do NOT add Buffered(1)
    # at these KB sizes).
    out_t = pl.pallas_call(
        _mlp_kernel,
        out_shape=jax.ShapeDtypeStruct((1, B_pad), jnp.float32),
        grid_spec=pltpu.PrefetchScalarGridSpec(
            num_scalar_prefetch=0,
            grid=(num_steps,),
            in_specs=[
                x_spec,                                              # x tile [tile, in] f32
                pl.BlockSpec((mid, in_size), lambda i: (0, 0)),      # W1 (bf16)
                pl.BlockSpec((mid, 1), lambda i: (0, 0)),            # b1
                pl.BlockSpec((mid_half, mid), lambda i: (0, 0)),     # W2 (bf16)
                pl.BlockSpec((mid_half, 1), lambda i: (0, 0)),       # b2
                pl.BlockSpec((mid_half, 1), lambda i: (0, 0)),       # w3 column
                pl.BlockSpec((1, 1), lambda i: (0, 0)),              # b3
            ],
            out_specs=pl.BlockSpec((1, tile), lambda i: (0, i)),
        ),
        compiler_params=pltpu.CompilerParams(
            dimension_semantics=("parallel",)),
        cost_estimate=cost,
    )(x, w1.astype(jnp.bfloat16), b1, w2.astype(jnp.bfloat16), b2, w3, b3)

    # Padded batch rows (zero-filled x rows beyond B) are computed but sliced
    # off here; correctness does NOT rely on the biases being zero.
    return out_t[:, :B].T                                 # [B, 1]


# ----------------------------------------------------------------------------
# Parameter setup (plain JAX glue): deterministic init + spectral norm.
# ----------------------------------------------------------------------------
def _spectral_normalize(w_out_in, key, n_power_iterations=1):
    """Mimics torch.nn.utils.spectral_norm on a Linear weight [out, in]."""
    out_dim, in_dim = w_out_in.shape
    u = jax.random.normal(key, (out_dim,), dtype=jnp.float32)
    u = u / (jnp.linalg.norm(u) + 1e-12)
    v = jnp.zeros((in_dim,), dtype=jnp.float32)
    for _ in range(n_power_iterations):
        v = w_out_in.T @ u
        v = v / (jnp.linalg.norm(v) + 1e-12)
        u = w_out_in @ v
        u = u / (jnp.linalg.norm(u) + 1e-12)
    sigma = u @ (w_out_in @ v)
    return w_out_in / sigma


def make_params(mask_len, mid_size, key):
    """weights_init: weight ~ N(0, 0.01), bias = 0; then spectral norm."""
    # TODO(synk): torch spectral_norm keeps a persistent `u` buffer updated on
    # every forward; here one deterministic power iteration is applied at init,
    # so values match only the first post-init forward (modeling fidelity, not
    # a kernel issue).
    k1, k2, k3, ku1, ku2, ku3 = jax.random.split(key, 6)
    w1 = 0.01 * jax.random.normal(k1, (mid_size, mask_len), jnp.float32)
    w2 = 0.01 * jax.random.normal(k2, (mid_size // 2, mid_size), jnp.float32)
    w3 = 0.01 * jax.random.normal(k3, (1, mid_size // 2), jnp.float32)
    w1 = _spectral_normalize(w1, ku1)
    w2 = _spectral_normalize(w2, ku2)
    w3 = _spectral_normalize(w3, ku3)
    b1 = jnp.zeros((mid_size, 1), jnp.float32)
    b2 = jnp.zeros((mid_size // 2, 1), jnp.float32)
    b3 = jnp.zeros((1, 1), jnp.float32)
    return (w1, b1, w2, b2, w3.T, b3)   # w3 stored as [mid//2, 1] column


# ----------------------------------------------------------------------------
# Pure-JAX reference (PyTorch Linear semantics: y = x @ W.T + b).
# ----------------------------------------------------------------------------
def mlp_ref(x, w1, b1, w2, b2, w3, b3):
    h1 = jnp.maximum(x @ w1.T + b1.T, 0.0)
    h2 = jnp.maximum(h1 @ w2.T + b2.T, 0.0)
    return h2 @ w3 + b3


if __name__ == "__main__":
    # Shapes consistent with the module: args.mask_len=32, args.mid_size=32.
    batch, mask_len, mid_size = 8, 32, 32

    key = jax.random.PRNGKey(0)
    kx, kp = jax.random.split(key)
    x = jax.random.normal(kx, (batch, mask_len), dtype=jnp.float32)
    w1, b1, w2, b2, w3, b3 = make_params(mask_len, mid_size, kp)

    out = jax.block_until_ready(mlp_forward(x, w1, b1, w2, b2, w3, b3))
    assert out.shape == (batch, 1)

    # Tight check vs a reference that uses the same bf16-rounded MXU feeds
    # (x/W1/W2 and the layer-2 activation), with f32 everywhere else.
    rd = lambda a: a.astype(jnp.bfloat16).astype(jnp.float32)
    h1 = jnp.maximum(rd(x) @ rd(w1).T + b1.T, 0.0)
    h2 = jnp.maximum(rd(h1) @ rd(w2).T + b2.T, 0.0)
    ref_bf16 = h2 @ w3 + b3
    assert jnp.allclose(out, ref_bf16, atol=5e-3, rtol=1e-2), "mismatch vs bf16 ref"

    # Looser check vs the plain float32 reference (bf16 matmul feeds).
    ref_f32 = mlp_ref(x, w1, b1, w2, b2, w3, b3)
    assert jnp.allclose(out, ref_f32, atol=2e-2, rtol=2e-2), "mismatch vs f32 ref"

    print("KERNEL_OK")
</pallas_src>

<mosaic_0001>
module attributes {stable_mosaic.version = 11 : i64} {
  func.func @_mlp_kernel(%arg0: i32, %arg1: memref<128x32xf32, #tpu.memory_space<vmem>>, %arg2: memref<32x32xbf16, #tpu.memory_space<vmem>>, %arg3: memref<32x1xf32, #tpu.memory_space<vmem>>, %arg4: memref<16x32xbf16, #tpu.memory_space<vmem>>, %arg5: memref<16x1xf32, #tpu.memory_space<vmem>>, %arg6: memref<16x1xf32, #tpu.memory_space<vmem>>, %arg7: memref<1x1xf32, #tpu.memory_space<vmem>>, %arg8: memref<1x128xf32, #tpu.memory_space<vmem>>) attributes {dimension_semantics = [#tpu.dimension_semantics<parallel>], iteration_bounds = array<i64: 1>, scalar_prefetch = 0 : i64, scratch_operands = 0 : i64, tpu.core_type = #tpu.core_type<tc>, window_params = [{transform_indices = @transform_0, window_bounds = array<i64: 128, 32>}, {pipeline_mode = #tpu.pipeline_mode<synchronous>, transform_indices = @transform_1, window_bounds = array<i64: 32, 32>}, {pipeline_mode = #tpu.pipeline_mode<synchronous>, transform_indices = @transform_2, window_bounds = array<i64: 32, 1>}, {pipeline_mode = #tpu.pipeline_mode<synchronous>, transform_indices = @transform_3, window_bounds = array<i64: 16, 32>}, {pipeline_mode = #tpu.pipeline_mode<synchronous>, transform_indices = @transform_4, window_bounds = array<i64: 16, 1>}, {pipeline_mode = #tpu.pipeline_mode<synchronous>, transform_indices = @transform_5, window_bounds = array<i64: 16, 1>}, {pipeline_mode = #tpu.pipeline_mode<synchronous>, transform_indices = @transform_6, window_bounds = array<i64: 1, 1>}, {transform_indices = @transform_7, window_bounds = array<i64: 1, 128>}]} {
    %c0 = arith.constant 0 : index
    %c0_0 = arith.constant 0 : index
    %0 = vector.load %arg1[%c0, %c0_0] : memref<128x32xf32, #tpu.memory_space<vmem>>, vector<128x32xf32>
    %1 = arith.truncf %0 : vector<128x32xf32> to vector<128x32xbf16>
    %c0_1 = arith.constant 0 : index
    %c0_2 = arith.constant 0 : index
    %2 = vector.load %arg2[%c0_1, %c0_2] : memref<32x32xbf16, #tpu.memory_space<vmem>>, vector<32x32xbf16>
    %cst = arith.constant dense<0.000000e+00> : vector<32x128xf32>
    %3 = tpu.matmul %2, %1, %cst {dimension_numbers = #tpu.dot_dimension_numbers<[1], [1], [0], [0], [0, 0, 1, 0], [], []>} : vector<32x32xbf16>, vector<128x32xbf16>, vector<32x128xf32> -> vector<32x128xf32>
    %c0_3 = arith.constant 0 : index
    %c0_4 = arith.constant 0 : index
    %4 = vector.load %arg3[%c0_3, %c0_4] : memref<32x1xf32, #tpu.memory_space<vmem>>, vector<32x1xf32>
    %5 = vector.broadcast %4 : vector<32x1xf32> to vector<32x128xf32>
    %6 = arith.addf %3, %5 : vector<32x128xf32>
    %cst_5 = arith.constant 0.000000e+00 : f32
    %7 = vector.broadcast %cst_5 : f32 to vector<32x128xf32>
    %8 = arith.maximumf %6, %7 : vector<32x128xf32>
    %c0_6 = arith.constant 0 : index
    %c0_7 = arith.constant 0 : index
    %9 = vector.load %arg4[%c0_6, %c0_7] : memref<16x32xbf16, #tpu.memory_space<vmem>>, vector<16x32xbf16>
    %10 = arith.truncf %8 : vector<32x128xf32> to vector<32x128xbf16>
    %cst_8 = arith.constant dense<0.000000e+00> : vector<16x128xf32>
    %11 = tpu.matmul %9, %10, %cst_8 {dimension_numbers = #tpu.dot_dimension_numbers<[1], [0], [0], [1], [0, 0, 1, 1], [], []>} : vector<16x32xbf16>, vector<32x128xbf16>, vector<16x128xf32> -> vector<16x128xf32>
    %c0_9 = arith.constant 0 : index
    %c0_10 = arith.constant 0 : index
    %12 = vector.load %arg5[%c0_9, %c0_10] : memref<16x1xf32, #tpu.memory_space<vmem>>, vector<16x1xf32>
    %13 = vector.broadcast %12 : vector<16x1xf32> to vector<16x128xf32>
    %14 = arith.addf %11, %13 : vector<16x128xf32>
    %cst_11 = arith.constant 0.000000e+00 : f32
    %15 = vector.broadcast %cst_11 : f32 to vector<16x128xf32>
    %16 = arith.maximumf %14, %15 : vector<16x128xf32>
    %c0_12 = arith.constant 0 : index
    %c0_13 = arith.constant 0 : index
    %17 = vector.load %arg6[%c0_12, %c0_13] : memref<16x1xf32, #tpu.memory_space<vmem>>, vector<16x1xf32>
    %18 = vector.broadcast %17 : vector<16x1xf32> to vector<16x128xf32>
    %19 = arith.mulf %16, %18 : vector<16x128xf32>
    %cst_14 = arith.constant dense<0.000000e+00> : vector<128xf32>
    %20 = vector.multi_reduction <add>, %19, %cst_14 [0] : vector<16x128xf32> to vector<128xf32>
    %21 = vector.shape_cast %20 : vector<128xf32> to vector<1x128xf32>
    %c0_15 = arith.constant 0 : index
    %c0_16 = arith.constant 0 : index
    %22 = vector.load %arg7[%c0_15, %c0_16] : memref<1x1xf32, #tpu.memory_space<vmem>>, vector<1x1xf32>
    %23 = vector.broadcast %22 : vector<1x1xf32> to vector<1x128xf32>
    %24 = arith.addf %21, %23 : vector<1x128xf32>
    %c0_17 = arith.constant 0 : index
    %c0_18 = arith.constant 0 : index
    %25 = vector.load %arg8[%c0_17, %c0_18] : memref<1x128xf32, #tpu.memory_space<vmem>>, vector<1x128xf32>
    tpu.vector_store %arg8[%c0_17, %c0_18], %24 {strides = array<i32>} : memref<1x128xf32, #tpu.memory_space<vmem>>, vector<1x128xf32>,
    return
  }
  func.func @transform_0(%arg0: i32) -> (i32, i32) {
    %c0_i32 = arith.constant 0 : i32
    %c0_i32_0 = arith.constant 0 : i32
    return %arg0, %c0_i32 : i32, i32
  }
  func.func @transform_1(%arg0: i32) -> (i32, i32) {
    %c0_i32 = arith.constant 0 : i32
    %c0_i32_0 = arith.constant 0 : i32
    %c0_i32_1 = arith.constant 0 : i32
    return %c0_i32, %c0_i32_0 : i32, i32
  }
  func.func @transform_2(%arg0: i32) -> (i32, i32) {
    %c0_i32 = arith.constant 0 : i32
    %c0_i32_0 = arith.constant 0 : i32
    %c0_i32_1 = arith.constant 0 : i32
    return %c0_i32, %c0_i32_0 : i32, i32
  }
  func.func @transform_3(%arg0: i32) -> (i32, i32) {
    %c0_i32 = arith.constant 0 : i32
    %c0_i32_0 = arith.constant 0 : i32
    %c0_i32_1 = arith.constant 0 : i32
    return %c0_i32, %c0_i32_0 : i32, i32
  }
  func.func @transform_4(%arg0: i32) -> (i32, i32) {
    %c0_i32 = arith.constant 0 : i32
    %c0_i32_0 = arith.constant 0 : i32
    %c0_i32_1 = arith.constant 0 : i32
    return %c0_i32, %c0_i32_0 : i32, i32
  }
  func.func @transform_5(%arg0: i32) -> (i32, i32) {
    %c0_i32 = arith.constant 0 : i32
    %c0_i32_0 = arith.constant 0 : i32
    %c0_i32_1 = arith.constant 0 : i32
    return %c0_i32, %c0_i32_0 : i32, i32
  }
  func.func @transform_6(%arg0: i32) -> (i32, i32) {
    %c0_i32 = arith.constant 0 : i32
    %c0_i32_0 = arith.constant 0 : i32
    %c0_i32_1 = arith.constant 0 : i32
    return %c0_i32, %c0_i32_0 : i32, i32
  }
  func.func @transform_7(%arg0: i32) -> (i32, i32) {
    %c0_i32 = arith.constant 0 : i32
    %c0_i32_0 = arith.constant 0 : i32
    return %c0_i32, %arg0 : i32, i32
  }
}

</mosaic_0001>

<llo_original>
// kernel: tpu_custom_call.1
$region0: #{tpu_custom_call.1}
  #allocation0 [shape = 'u32[]', space=smem, size = 0x4, offset = 0x4, fixed_abs, tag = 'smem constant byte address 0x4 - core index']
  #allocation1 [shape = 'u32[144,128]{1,0:T(1,128)}', space=vmem, size = 0x12000, scoped, tag = 'internal scratch']
  #allocation2 [shape = 'f32[1,1]{1,0:T(1,128)S(1)}', space=vmem, size = 0x200, scoped, tag = 'scoped memory for tpu_custom_call.1']
  %s0 = inlined_call_operand.vmem [shape: f32[128,32], index: 0, kind: input, shape index: {}]
  %s1 = inlined_call_operand.vmem [shape: bf16[32,32], index: 1, kind: input, shape index: {}]
  %s2 = inlined_call_operand.vmem [shape: f32[32,1], index: 2, kind: input, shape index: {}]
  %s3 = inlined_call_operand.vmem [shape: bf16[16,32], index: 3, kind: input, shape index: {}]
  %s4 = inlined_call_operand.vmem [shape: f32[16,1], index: 4, kind: input, shape index: {}]
  %s5 = inlined_call_operand.vmem [shape: f32[16,1], index: 5, kind: input, shape index: {}]
  %s6 = inlined_call_operand.<no memory space> [shape: f32[1,1], index: 6, kind: input, shape index: {}]
  %s7 = inlined_call_operand.hbm [shape: f32[1,128], index: 7, kind: output, shape index: {}]
  %s8 = sld [smem:[#allocation0]]
  $region38: #{tpu_custom_call.1} parent=0
    _
  %s10 = ssub.s32 1, %s8
  %s11 = scalar_select 0, %s10, %s8
  %v12 = vstv %s6
  %13 = vst [vmem:[#allocation2] sm:$0x1] %v12
  $region1: #{tpu_custom_call.1} parent=0
    #allocation3 [shape = 'u8[512]{0}', space=vmem, size = 0x400, scoped, tag = 'output window, operand 0, single buffered']
    #allocation4 [shape = 's32[1]{0}', space=sflag, size = 0x4, scoped, tag = 'scoped memory for tpu_custom_call.1']
    %14 = vsyncpa [#allocation4], 0
    // Predicated region
    $region2: #{tpu_custom_call.1} parent=1 // pred_check
      _
    $region3: #{tpu_custom_call.1} parent=1 // pred_check_branch
      %16 = sbr.rel (0) target = $region5
    $region4: #{tpu_custom_call.1} parent=1 // pred_region
      _
    $region5: #{tpu_custom_call.1} parent=1 // pred_fallthru
      _
    // Predicated region
    $region6: #{tpu_custom_call.1} parent=1 // pred_check
      _
    $region7: #{tpu_custom_call.1} parent=1 // pred_check_branch
      %18 = sbr.rel (0) target = $region9
    $region8: #{tpu_custom_call.1} parent=1 // pred_region
      _
    $region9: #{tpu_custom_call.1} parent=1 // pred_fallthru
      _
    // Predicated region
    $region10: #{tpu_custom_call.1} parent=1 // pred_check
      _
    $region11: #{tpu_custom_call.1} parent=1 // pred_check_branch
      %20 = sbr.rel (0) target = $region13
    $region12: #{tpu_custom_call.1} parent=1 // pred_region
      _
    $region13: #{tpu_custom_call.1} parent=1 // pred_fallthru
      _
    // Predicated region
    $region14: #{tpu_custom_call.1} parent=1 // pred_check
      _
    $region15: #{tpu_custom_call.1} parent=1 // pred_check_branch
      %22 = sbr.rel (0) target = $region17
    $region16: #{tpu_custom_call.1} parent=1 // pred_region
      _
    $region17: #{tpu_custom_call.1} parent=1 // pred_fallthru
      _
    // Predicated region
    $region18: #{tpu_custom_call.1} parent=1 // pred_check
      _
    $region19: #{tpu_custom_call.1} parent=1 // pred_check_branch
      %24 = sbr.rel (0) target = $region21
    $region20: #{tpu_custom_call.1} parent=1 // pred_region
      _
    $region21: #{tpu_custom_call.1} parent=1 // pred_fallthru
      _
    // Predicated region
    $region22: #{tpu_custom_call.1} parent=1 // pred_check
      _
    $region23: #{tpu_custom_call.1} parent=1 // pred_check_branch
      %26 = sbr.rel (0) target = $region25
    $region24: #{tpu_custom_call.1} parent=1 // pred_region
      _
    $region25: #{tpu_custom_call.1} parent=1 // pred_fallthru
      _
    // Predicated region
    $region26: #{tpu_custom_call.1} parent=1 // pred_check
      _
    $region27: #{tpu_custom_call.1} parent=1 // pred_check_branch
      %28 = sbr.rel (0) target = $region29
    $region28: #{tpu_custom_call.1} parent=1 // pred_region
      _
    $region29: #{tpu_custom_call.1} parent=1 // pred_fallthru
      _
    %v30 = vld [vmem:[%s0] sm:$0xff]
    %v31 = vld [vmem:[%s0 + $0x8] sm:$0xff]
    %v32 = vld [vmem:[%s0 + $0x10] sm:$0xff]
    %v33 = vld [vmem:[%s0 + $0x18] sm:$0xff]
    %v34 = vld [vmem:[%s0 + $0x20] sm:$0xff]
    %v35 = vld [vmem:[%s0 + $0x28] sm:$0xff]
    %v36 = vld [vmem:[%s0 + $0x30] sm:$0xff]
    %v37 = vld [vmem:[%s0 + $0x38] sm:$0xff]
    %v38 = vld [vmem:[%s0 + $0x40] sm:$0xff]
    %v39 = vld [vmem:[%s0 + $0x48] sm:$0xff]
    %v40 = vld [vmem:[%s0 + $0x50] sm:$0xff]
    %v41 = vld [vmem:[%s0 + $0x58] sm:$0xff]
    %v42 = vld [vmem:[%s0 + $0x60] sm:$0xff]
    %v43 = vld [vmem:[%s0 + $0x68] sm:$0xff]
    %v44 = vld [vmem:[%s0 + $0x70] sm:$0xff]
    %v45 = vld [vmem:[%s0 + $0x78] sm:$0xff]
    %v46 = vpack.c.bf16 %v31, %v30
    %v47 = vpack.c.bf16 %v33, %v32
    %v48 = vpack.c.bf16 %v35, %v34
    %v49 = vpack.c.bf16 %v37, %v36
    %v50 = vpack.c.bf16 %v39, %v38
    %v51 = vpack.c.bf16 %v41, %v40
    %v52 = vpack.c.bf16 %v43, %v42
    %v53 = vpack.c.bf16 %v45, %v44
    %v54 = vld [vmem:[%s1] sm:$0xf]
    %v55 = vld [vmem:[%s1 + $0x4] sm:$0xf]
    %v56 = vld [vmem:[%s1 + $0x8] sm:$0xf]
    %v57 = vld [vmem:[%s1 + $0xc] sm:$0xf]
    %v58 = vld [vmem:[%s2] sm:$0xff]
    %v59 = vld [vmem:[%s2 + $0x8] sm:$0xff]
    %v60 = vld [vmem:[%s2 + $0x10] sm:$0xff]
    %v61 = vld [vmem:[%s2 + $0x18] sm:$0xff]
    %63 = vset.pattern.permute.xlu0 0
    %64 = vperm.xlu0 %63, %v58
    %v65 = vpop.permute.xlu0 %64
    %68 = vset.pattern.permute.xlu0 0
    %69 = vperm.xlu0 %68, %v59
    %v70 = vpop.permute.xlu0 %69
    %73 = vset.pattern.permute.xlu0 0
    %74 = vperm.xlu0 %73, %v60
    %v75 = vpop.permute.xlu0 %74
    %78 = vset.pattern.permute.xlu0 0
    %79 = vperm.xlu0 %78, %v61
    %v80 = vpop.permute.xlu0 %79
    %v86 = vunpack.c.l.b16 %v54
    %v87 = vunpack.c.l.b16 %v55
    %v88 = vunpack.c.l.b16 %v56
    %v89 = vunpack.c.l.b16 %v57
    %v90 = vpack.c.b16 %v87, %v86
    %v91 = vpack.c.b16 %v89, %v88
    %vm92 = vcmask 261120
    %v94 = vsel %vm92, %v90, 0
    %v97 = vsel %vm92, %v91, 0
    %v100 = vsel %vm92, %v46, 0
    %v103 = vsel %vm92, %v47, 0
    %v106 = vsel %vm92, %v48, 0
    %v109 = vsel %vm92, %v49, 0
    %v112 = vsel %vm92, %v50, 0
    %v115 = vsel %vm92, %v51, 0
    %v118 = vsel %vm92, %v52, 0
    %v121 = vsel %vm92, %v53, 0
    %123 = vmatprep.subr.bf16.mxu0 0
    %124 = vmatpush1.bf16.xpose.msra.mxu0 %v121
    %125 = vmatprep.subr.bf16.mxu0 0
    %126 = vmatpush1.bf16.xpose.msra.mxu0 %v118
    %127 = vmatprep.subr.bf16.mxu0 0
    %128 = vmatpush1.bf16.xpose.msra.mxu0 %v115
    %129 = vmatprep.subr.bf16.mxu0 0
    %130 = vmatpush1.bf16.xpose.msra.mxu0 %v112
    %131 = vmatprep.subr.bf16.mxu0 0
    %132 = vmatpush1.bf16.xpose.msra.mxu0 %v109
    %133 = vmatprep.subr.bf16.mxu0 0
    %134 = vmatpush1.bf16.xpose.msra.mxu0 %v106
    %135 = vmatprep.subr.bf16.mxu0 0
    %136 = vmatpush1.bf16.xpose.msra.mxu0 %v103
    %137 = vmatprep.subr.bf16.mxu0 0
    %138 = vmatpush1.bf16.xpose.msra.mxu0 %v100
    %139 = vmatprep.subr.bf16.mxu0 0
    %140 = vmatpush2.bf16.xpose.msra.mxu0 0
    %141 = vmatprep.subr.bf16.mxu0 0
    %142 = vmatpush2.bf16.xpose.msra.mxu0 0
    %143 = vmatprep.subr.bf16.mxu0 0
    %144 = vmatpush2.bf16.xpose.msra.mxu0 0
    %145 = vmatprep.subr.bf16.mxu0 0
    %146 = vmatpush2.bf16.xpose.msra.mxu0 0
    %147 = vmatprep.subr.bf16.mxu0 0
    %148 = vmatpush2.bf16.xpose.msra.mxu0 0
    %149 = vmatprep.subr.bf16.mxu0 0
    %150 = vmatpush2.bf16.xpose.msra.mxu0 0
    %151 = vmatprep.subr.bf16.mxu0 0
    %152 = vmatpush2.bf16.xpose.msra.mxu0 0
    %153 = vmatprep.subr.bf16.mxu0 0
    %154 = vmatpush2.bf16.xpose.msra.mxu0 0
    %155 = vmatprep.mubr.bf16.mxu0 0
    %156 = vmatmul.mubr.bf16.gmra.mxu0 %v94
    %v157 = vpop.f32.mrf.mxu0
    %v158 = vadd.f32 %v65, %v157
    %v159 = vpop.f32.mrf.mxu0
    %v160 = vpop.f32.mrf.mxu0
    %v161 = vadd.f32 %v70, %v160
    %v162 = vpop.f32.mrf.mxu0
    %163 = vmatprep.mubr.bf16.mxu0 0
    %164 = vmatmul.mubr.bf16.gmra.mxu0 %v97
    %v165 = vpop.f32.mrf.mxu0
    %v166 = vadd.f32 %v75, %v165
    %v167 = vpop.f32.mrf.mxu0
    %v168 = vpop.f32.mrf.mxu0
    %v169 = vadd.f32 %v80, %v168
    %v170 = vpop.f32.mrf.mxu0
    %171 = vdwg.mxu0
    %v172 = vmax.f32 %v158, 0.0
    %v173 = vmax.f32 %v161, 0.0
    %v174 = vmax.f32 %v166, 0.0
    %v175 = vmax.f32 %v169, 0.0
    %v176 = vld [vmem:[%s3] sm:$0xf]
    %v177 = vld [vmem:[%s3 + $0x4] sm:$0xf]
    %v178 = vpack.c.bf16 %v173, %v172
    %v179 = vpack.c.bf16 %v175, %v174
    %v180 = vld [vmem:[%s4] sm:$0xff]
    %v181 = vld [vmem:[%s4 + $0x8] sm:$0xff]
    %183 = vset.pattern.permute.xlu0 0
    %184 = vperm.xlu0 %183, %v180
    %v185 = vpop.permute.xlu0 %184
    %188 = vset.pattern.permute.xlu0 0
    %189 = vperm.xlu0 %188, %v181
    %v190 = vpop.permute.xlu0 %189
    %v194 = vunpack.c.l.b16 %v176
    %v195 = vunpack.c.l.b16 %v177
    %v196 = vpack.c.b16 %v195, %v194
    %v198 = vsel %vm92, %v196, 0
    %200 = vmatprep.subr.bf16.mxu0 0
    %201 = vmatpush1.bf16.msra.mxu0 0
    %202 = vmatprep.subr.bf16.mxu0 0
    %203 = vmatpush1.bf16.msra.mxu0 0
    %204 = vmatprep.subr.bf16.mxu0 0
    %205 = vmatpush1.bf16.msra.mxu0 0
    %206 = vmatprep.subr.bf16.mxu0 0
    %207 = vmatpush1.bf16.msra.mxu0 0
    %208 = vmatprep.subr.bf16.mxu0 0
    %209 = vmatpush1.bf16.msra.mxu0 0
    %210 = vmatprep.subr.bf16.mxu0 0
    %211 = vmatpush1.bf16.msra.mxu0 0
    %212 = vmatprep.subr.bf16.mxu0 0
    %213 = vmatpush1.bf16.msra.mxu0 %v179
    %214 = vmatprep.subr.bf16.mxu0 0
    %215 = vmatpush1.bf16.msra.mxu0 %v178
    %216 = vmatprep.subr.bf16.mxu0 0
    %217 = vmatpush2.bf16.msra.mxu0 0
    %218 = vmatprep.subr.bf16.mxu0 0
    %219 = vmatpush2.bf16.msra.mxu0 0
    %220 = vmatprep.subr.bf16.mxu0 0
    %221 = vmatpush2.bf16.msra.mxu0 0
    %222 = vmatprep.subr.bf16.mxu0 0
    %223 = vmatpush2.bf16.msra.mxu0 0
    %224 = vmatprep.subr.bf16.mxu0 0
    %225 = vmatpush2.bf16.msra.mxu0 0
    %226 = vmatprep.subr.bf16.mxu0 0
    %227 = vmatpush2.bf16.msra.mxu0 0
    %228 = vmatprep.subr.bf16.mxu0 0
    %229 = vmatpush2.bf16.msra.mxu0 0
    %230 = vmatprep.subr.bf16.mxu0 0
    %231 = vmatpush2.bf16.msra.mxu0 0
    %232 = vmatprep.mubr.bf16.mxu0 0
    %233 = vmatmul.mubr.bf16.gmra.mxu0 %v198
    %v234 = vpop.f32.mrf.mxu0
    %v235 = vadd.f32 %v185, %v234
    %v236 = vpop.f32.mrf.mxu0
    %v237 = vpop.f32.mrf.mxu0
    %v238 = vadd.f32 %v190, %v237
    %v239 = vpop.f32.mrf.mxu0
    %240 = vdwg.mxu0
    %v241 = vmax.f32 %v235, 0.0
    %v242 = vmax.f32 %v238, 0.0
    %v243 = vld [vmem:[%s5] sm:$0xff]
    %v244 = vld [vmem:[%s5 + $0x8] sm:$0xff]
    %246 = vset.pattern.permute.xlu0 0
    %247 = vperm.xlu0 %246, %v243
    %v248 = vpop.permute.xlu0 %247
    %251 = vset.pattern.permute.xlu0 0
    %252 = vperm.xlu0 %251, %v244
    %v253 = vpop.permute.xlu0 %252
    %v255 = vmul.f32 %v241, %v248
    %v256 = vmul.f32 %v242, %v253
    %v257 = vadd.f32 %v255, %v256
    %v258 = vrot.slane %v257, 4
    %v259 = vadd.f32 %v257, %v258
    %v260 = vrot.slane %v259, 2
    %v261 = vadd.f32 %v259, %v260
    %v262 = vrot.slane %v261, 1
    %v263 = vadd.f32 %v261, %v262
    %v264 = vld [vmem:[#allocation2] sm:$0x1]
    %266 = vset.pattern.permute.xlu0 0
    %267 = vperm.xlu0 %266, %v264
    %v268 = vpop.permute.xlu0 %267
    %v270 = vlaneseq
    %v271 = vshrl.u32 %v270, 7
    %v272 = vsub.s32 0, %v271
    %v273 = vrot.slane %v268, %v272
    %v274 = vadd.f32 %v263, %v273
    %275 = vst [vmem:[#allocation3] sm:$0x1] %v274
    // Predicated region
    $region30: #{tpu_custom_call.1} parent=1 // pred_check
      _
    $region31: #{tpu_custom_call.1} parent=1 // pred_check_branch
      %277 = sbr.rel (0) target = $region33
    $region32: #{tpu_custom_call.1} parent=1 // pred_region
      %s279 = ssub.s32 16, 16
      %280 = vsyncadd [#allocation4], %s279
      %s282 = sshll.u32 [#allocation3], 4
      %s283 = int_to_ptr.vmem [resolvable:$true] %s282
      %285 = dma.vmem_to_hbm [thread:$0]  %s283, 16, %s7, [#allocation4]
    $region33: #{tpu_custom_call.1} parent=1 // pred_fallthru
      _
    // Predicated region
    $region34: #{tpu_custom_call.1} parent=1 // pred_check
      _
    $region35: #{tpu_custom_call.1} parent=1 // pred_check_branch
      %287 = sbr.rel (0) target = $region37
    $region36: #{tpu_custom_call.1} parent=1 // pred_region
      %288 = dma.done [#allocation4], 16
    $region37: #{tpu_custom_call.1} parent=1 // pred_fallthru
      _
    %289 = vsyncpa [#allocation4], 1

</llo_original>
